<compile_context>
chip_gen: v7x
topology: tpu7x:2x2x1
jax: 0.10.0
libtpu: 0.0.40
codegen_flags: <defaults>
</compile_context>

<pallas_src>
import functools

import jax
import jax.numpy as jnp
from jax.experimental import pallas as pl
from jax.experimental.pallas import tpu as pltpu


def _int_pow(x, n):
    """x**n for non-negative integer n via repeated multiplication (no EUP)."""
    if n == 0:
        return jnp.ones_like(x)
    r = x if (n & 1) else None
    n >>= 1
    while n:
        x = x * x
        if n & 1:
            r = x if r is None else r * x
        n >>= 1
    return r


def _focal_soft_nll_kernel(labels_ref, logits_ref, num_ref, *, gamma, ignore_lb):
    """One (batch b, super-chunk p, pixel-tile t) step.

    labels_ref: (1, 1, T) int32      logits_ref: (1, C, T) f32/bf16
    num_ref:    (1, 1, T) f32 resident accumulator for this (b, p) chunk.
    """
    @pl.when(pl.program_id(2) == 0)
    def _():
        num_ref[...] = jnp.zeros_like(num_ref)

    x = logits_ref[0].astype(jnp.float32)              # (C, T)
    t = labels_ref[0]                                  # (1, T) int32
    C = x.shape[0]

    # --- softmax / log_softmax over the class (sublane) axis ---------------
    m = jnp.max(x, axis=0, keepdims=True)              # (1, T)
    xm = x - m                                         # (C, T)
    e = jnp.exp(xm)                                    # (C, T)
    s = jnp.sum(e, axis=0, keepdims=True)              # (1, T)
    # approximate reciprocal feeds only the focal factor; log path is exact
    score = e * pl.reciprocal(s, approx=True)          # softmax      (C, T)
    log_score = xm - jnp.log(s)                        # log_softmax  (C, T)

    # --- focal factor: repeated multiply for integer gamma (no EUP pow) ----
    one_minus = 1.0 - score
    if float(gamma).is_integer() and gamma >= 0:
        factor = _int_pow(one_minus, int(gamma))
    else:
        # approx reciprocal can push score slightly above 1.0 -> clamp so
        # pow(negative, non-integer) cannot produce NaN
        factor = jnp.power(jnp.maximum(one_minus, 0.0), gamma)
    pred = factor * log_score                          # (C, T)

    # --- fused soft-target weights (matches soft_nll exactly) --------------
    cidx = jax.lax.broadcasted_iota(jnp.int32, (C, 1), 0)   # (C, 1)
    ad = jnp.abs(cidx - t)                             # (C, T)
    edge = jnp.logical_or(t == 0, t == C - 1)          # (1, T)
    base = jnp.where(edge, 0.95, 0.9)                  # (1, T)
    w = jnp.where(ad <= 1, jnp.where(ad == 0, base, 0.05), 0.0)   # (C, T)

    # --- class-axis (sublane) reduce; validity mask on the (1,T) sum -------
    partial = jnp.sum(w * pred, axis=0, keepdims=True)            # (1, T)
    valid = t != ignore_lb                                        # (1, T)
    num_ref[0] = num_ref[0] + jnp.where(valid, partial, 0.0)


def softmax_focal_loss(logits, labels, *, gamma=2.0, ignore_lb=255,
                       tile_hw=None, num_outer=None):
    """Pallas implementation of SoftmaxFocalLoss(gamma, ignore_lb, soft_loss=True).

    logits: (N, C, H, W) float32 or bfloat16;  labels: (N, H, W) int.
    """
    N, C, H, W = logits.shape
    HW = H * W

    logits_r = logits.reshape(N, C, HW)                # keep caller dtype (bf16 ok)
    labels_i32 = labels.astype(jnp.int32)
    labels_r = labels_i32.reshape(N, 1, HW)
    itemsize = jnp.dtype(logits_r.dtype).itemsize

    # valid-pixel count in plain JAX (the kernel no longer emits `den`)
    valid_count = jnp.sum(labels_i32 != ignore_lb).astype(jnp.float32)

    # --- per-TC VMEM capacity with a conservative fallback ------------------
    vmem_cap = 64 * 1024 * 1024                        # v7x per-TC physical
    try:
        vmem_cap = int(getattr(pltpu.get_tpu_info(), "vmem_capacity_bytes",
                               vmem_cap))
    except Exception:
        pass

    # --- lane-dense pixel tile: ~4 MiB of logits per step, VMEM-bounded -----
    hw128 = int(pl.cdiv(HW, 128)) * 128
    if tile_hw is None:
        budget = int(0.35 * vmem_cap)                  # double-buffered streams
        per_px = C * itemsize + 4 + 4                  # logits + labels + out
        cap_px = max(128, budget // (2 * per_px))
        target_px = (4 * 1024 * 1024) // max(1, C * itemsize)
        tile_hw = min(cap_px, max(512, target_px))
    tile_hw = max(128, (int(min(tile_hw, hw128)) // 128) * 128)
    num_tiles = int(pl.cdiv(HW, tile_hw))

    # --- split tiles into (parallel super-chunks) x (arbitrary inner) -------
    # Keep N * num_outer >= ~8 so both v7x TensorCores have balanced work even
    # for N = 1, while preferring splits with zero / minimal tile padding.
    if num_outer is None:
        desired = min(num_tiles, max(1, -(-8 // max(1, N))))
        num_outer, best_pad = 1, None
        for cand in range(desired, 0, -1):
            pad_tiles = cand * (-(-num_tiles // cand)) - num_tiles
            if best_pad is None or pad_tiles < best_pad:
                num_outer, best_pad = cand, pad_tiles
            if pad_tiles == 0:
                break
    num_outer = max(1, min(int(num_outer), num_tiles))
    num_inner = int(pl.cdiv(num_tiles, num_outer))
    hw_pad = num_outer * num_inner * tile_hw

    if hw_pad != HW:
        # pad with ignore-labeled pixels -> zero contribution to num & count
        logits_r = jnp.pad(logits_r, ((0, 0), (0, 0), (0, hw_pad - HW)))
        labels_r = jnp.pad(labels_r, ((0, 0), (0, 0), (0, hw_pad - HW)),
                           constant_values=ignore_lb)

    # --- scoped-VMEM limit with headroom, derived from the chip -------------
    vmem_est = (2 * C * tile_hw * itemsize             # logits double buffer
                + 2 * tile_hw * 4                      # labels double buffer
                + 2 * tile_hw * 4)                     # resident num block
    vmem_limit = int(min(max(16 * 1024 * 1024, 4 * vmem_est),
                         int(0.45 * vmem_cap)))
    vmem_limit = int(min(max(vmem_limit, 2 * vmem_est + (1 << 20)), vmem_cap))

    kernel = functools.partial(_focal_soft_nll_kernel,
                               gamma=float(gamma), ignore_lb=int(ignore_lb))

    num = pl.pallas_call(
        kernel,
        out_shape=jax.ShapeDtypeStruct((N * num_outer, 1, tile_hw), jnp.float32),
        grid_spec=pltpu.PrefetchScalarGridSpec(
            num_scalar_prefetch=0,
            grid=(N, num_outer, num_inner),
            in_specs=[
                pl.BlockSpec((1, 1, tile_hw),
                             lambda b, p, t: (b, 0, p * num_inner + t)),  # labels
                pl.BlockSpec((1, C, tile_hw),
                             lambda b, p, t: (b, 0, p * num_inner + t)),  # logits
            ],
            out_specs=pl.BlockSpec((1, 1, tile_hw),
                                   lambda b, p, t: (b * num_outer + p, 0, 0)),
        ),
        compiler_params=pltpu.CompilerParams(
            dimension_semantics=("parallel", "parallel", "arbitrary"),
            vmem_limit_bytes=vmem_limit),
    )(labels_r, logits_r)

    # tiny lane-dense final reduction outside the kernel.
    # NOTE: if every pixel is ignored this divides by zero (NaN), matching
    # the PyTorch module's behavior.
    return -jnp.sum(num) / valid_count


def _reference_loss(logits, labels, *, gamma=2.0, ignore_lb=255):
    """Pure-JAX reference mirroring the PyTorch forward + soft_nll."""
    logits = logits.astype(jnp.float32)
    C = logits.shape[1]
    scores = jax.nn.softmax(logits, axis=1)
    factor = (1.0 - scores) ** gamma
    pred = factor * jax.nn.log_softmax(logits, axis=1)

    t = labels[:, None, :, :]
    cidx = jnp.arange(C, dtype=jnp.int32).reshape(1, C, 1, 1)
    valid = t != ignore_lb
    w = (0.9 * (cidx == t)
         + 0.05 * (cidx == (t - 1))
         + 0.05 * (cidx == (t + 1))
         + 0.05 * ((cidx == 0) & (t == 0))
         + 0.05 * ((cidx == C - 1) & (t == C - 1))).astype(jnp.float32)
    w = jnp.where(valid, w, 0.0)
    return -(w * pred).sum() / valid.sum()


def _make_inputs(key, N, C, H, W, ignore_lb):
    k1, k2, k3 = jax.random.split(key, 3)
    logits = jax.random.normal(k1, (N, C, H, W), dtype=jnp.float32)
    labels = jax.random.randint(k2, (N, H, W), 0, C, dtype=jnp.int32)
    ignore_mask = jax.random.uniform(k3, (N, H, W)) < 0.1
    labels = jnp.where(ignore_mask, jnp.int32(ignore_lb), labels)
    return logits, labels


if __name__ == "__main__":
    key = jax.random.PRNGKey(0)
    gamma, ignore_lb = 2.0, 255
    # tolerance accounts for the single approximation source:
    # pl.reciprocal(approx=True) in the focal-factor path.
    RTOL = ATOL = 5e-3

    # 1) main check: N=2, C=4, 16x16, single HW tile
    logits, labels = _make_inputs(key, 2, 4, 16, 16, ignore_lb)
    loss = softmax_focal_loss(logits, labels, gamma=gamma, ignore_lb=ignore_lb)
    loss = jax.block_until_ready(loss)
    ref = _reference_loss(logits, labels, gamma=gamma, ignore_lb=ignore_lb)
    assert jnp.allclose(loss, ref, rtol=RTOL, atol=ATOL), (loss, ref)

    # 2) multi-tile path (forced tile_hw=128 -> 2 tiles, exercises the second
    #    parallel super-chunk axis: grid (2, 2, 1))
    loss2 = softmax_focal_loss(logits, labels, gamma=gamma,
                               ignore_lb=ignore_lb, tile_hw=128)
    loss2 = jax.block_until_ready(loss2)
    assert jnp.allclose(loss2, ref, rtol=RTOL, atol=ATOL), (loss2, ref)

    # 3) non-multiple-of-128 spatial shape (ignore-padding) + bf16 input
    logits3, labels3 = _make_inputs(jax.random.PRNGKey(1), 2, 4, 10, 12, ignore_lb)
    logits3_bf16 = logits3.astype(jnp.bfloat16)
    loss3 = softmax_focal_loss(logits3_bf16, labels3, gamma=gamma,
                               ignore_lb=ignore_lb)
    loss3 = jax.block_until_ready(loss3)
    ref3 = _reference_loss(logits3_bf16, labels3, gamma=gamma,
                           ignore_lb=ignore_lb)
    assert jnp.allclose(loss3, ref3, rtol=RTOL, atol=ATOL), (loss3, ref3)

    print("KERNEL_OK")
</pallas_src>

<mosaic_0001>
module attributes {stable_mosaic.version = 11 : i64} {
  func.func @_focal_soft_nll_kernel(%arg0: i32, %arg1: i32, %arg2: i32, %arg3: memref<1x1x256xi32, #tpu.memory_space<vmem>>, %arg4: memref<1x4x256xf32, #tpu.memory_space<vmem>>, %arg5: memref<1x1x256xf32, #tpu.memory_space<vmem>>) attributes {dimension_semantics = [#tpu.dimension_semantics<parallel>, #tpu.dimension_semantics<parallel>, #tpu.dimension_semantics<arbitrary>], iteration_bounds = array<i64: 2, 1, 1>, scalar_prefetch = 0 : i64, scratch_operands = 0 : i64, tpu.core_type = #tpu.core_type<tc>, window_params = [{transform_indices = @transform_0, window_bounds = array<i64: 1, 1, 256>}, {transform_indices = @transform_1, window_bounds = array<i64: 1, 4, 256>}, {transform_indices = @transform_2, window_bounds = array<i64: 1, 1, 256>}]} {
    %c0_i32 = arith.constant 0 : i32
    %0 = arith.cmpi eq, %arg2, %c0_i32 : i32
    %1 = arith.extui %0 : i1 to i32
    %c0_i32_0 = arith.constant 0 : i32
    %2 = arith.cmpi ne, %1, %c0_i32_0 : i32
    scf.if %2 {
      %cst_22 = arith.constant 0.000000e+00 : f32
      %60 = vector.broadcast %cst_22 : f32 to vector<1x1x256xf32>
      %c0_23 = arith.constant 0 : index
      %c0_24 = arith.constant 0 : index
      %c0_25 = arith.constant 0 : index
      %61 = vector.load %arg5[%c0_23, %c0_24, %c0_25] : memref<1x1x256xf32, #tpu.memory_space<vmem>>, vector<1x1x256xf32>
      tpu.vector_store %arg5[%c0_23, %c0_24, %c0_25], %60 {strides = array<i32>} : memref<1x1x256xf32, #tpu.memory_space<vmem>>, vector<1x1x256xf32>,
    } else {
    }
    %c0 = arith.constant 0 : index
    %c0_1 = arith.constant 0 : index
    %c0_2 = arith.constant 0 : index
    %3 = vector.load %arg4[%c0, %c0_1, %c0_2] : memref<1x4x256xf32, #tpu.memory_space<vmem>>, vector<1x4x256xf32>
    %4 = vector.shape_cast %3 : vector<1x4x256xf32> to vector<4x256xf32>
    %c0_3 = arith.constant 0 : index
    %c0_4 = arith.constant 0 : index
    %c0_5 = arith.constant 0 : index
    %5 = vector.load %arg3[%c0_3, %c0_4, %c0_5] : memref<1x1x256xi32, #tpu.memory_space<vmem>>, vector<1x1x256xi32>
    %6 = vector.shape_cast %5 : vector<1x1x256xi32> to vector<1x256xi32>
    %cst = arith.constant dense<0xFF800000> : vector<256xf32>
    %7 = vector.multi_reduction <maximumf>, %4, %cst [0] : vector<4x256xf32> to vector<256xf32>
    %8 = vector.shape_cast %7 : vector<256xf32> to vector<1x256xf32>
    %9 = vector.broadcast %8 : vector<1x256xf32> to vector<4x256xf32>
    %10 = arith.subf %4, %9 : vector<4x256xf32>
    %11 = math.exp %10 : vector<4x256xf32>
    %cst_6 = arith.constant dense<0.000000e+00> : vector<256xf32>
    %12 = vector.multi_reduction <add>, %11, %cst_6 [0] : vector<4x256xf32> to vector<256xf32>
    %13 = vector.shape_cast %12 : vector<256xf32> to vector<1x256xf32>
    %14 = tpu.reciprocal %13 {approx = true} : vector<1x256xf32> -> vector<1x256xf32>
    %15 = vector.broadcast %14 : vector<1x256xf32> to vector<4x256xf32>
    %16 = arith.mulf %11, %15 : vector<4x256xf32>
    %17 = math.log %13 : vector<1x256xf32>
    %18 = vector.broadcast %17 : vector<1x256xf32> to vector<4x256xf32>
    %19 = arith.subf %10, %18 : vector<4x256xf32>
    %cst_7 = arith.constant 1.000000e+00 : f32
    %20 = vector.broadcast %cst_7 : f32 to vector<4x256xf32>
    %21 = arith.subf %20, %16 : vector<4x256xf32>
    %22 = arith.mulf %21, %21 : vector<4x256xf32>
    %23 = arith.mulf %22, %19 : vector<4x256xf32>
    %24 = tpu.iota {dimensions = array<i32: 0>} : vector<4x1xi32>
    %25 = vector.broadcast %24 : vector<4x1xi32> to vector<4x256xi32>
    %26 = vector.broadcast %6 : vector<1x256xi32> to vector<4x256xi32>
    %27 = arith.subi %25, %26 : vector<4x256xi32>
    %28 = math.absi %27 : vector<4x256xi32>
    %c0_i32_8 = arith.constant 0 : i32
    %29 = vector.broadcast %c0_i32_8 : i32 to vector<1x256xi32>
    %30 = arith.cmpi eq, %6, %29 : vector<1x256xi32>
    %c3_i32 = arith.constant 3 : i32
    %31 = vector.broadcast %c3_i32 : i32 to vector<1x256xi32>
    %32 = arith.cmpi eq, %6, %31 : vector<1x256xi32>
    %33 = arith.ori %30, %32 : vector<1x256xi1>
    %cst_9 = arith.constant 0.949999988 : f32
    %cst_10 = arith.constant 0.899999976 : f32
    %34 = vector.broadcast %cst_9 : f32 to vector<1x256xf32>
    %35 = vector.broadcast %cst_10 : f32 to vector<1x256xf32>
    %36 = arith.select %33, %34, %35 : vector<1x256xi1>, vector<1x256xf32>
    %c1_i32 = arith.constant 1 : i32
    %37 = vector.broadcast %c1_i32 : i32 to vector<4x256xi32>
    %38 = arith.cmpi sle, %28, %37 : vector<4x256xi32>
    %c0_i32_11 = arith.constant 0 : i32
    %39 = vector.broadcast %c0_i32_11 : i32 to vector<4x256xi32>
    %40 = arith.cmpi eq, %28, %39 : vector<4x256xi32>
    %cst_12 = arith.constant 5.000000e-02 : f32
    %41 = vector.shape_cast %36 : vector<1x256xf32> to vector<1x256xf32>
    %42 = vector.broadcast %41 : vector<1x256xf32> to vector<4x256xf32>
    %43 = vector.broadcast %cst_12 : f32 to vector<4x256xf32>
    %44 = arith.select %40, %42, %43 : vector<4x256xi1>, vector<4x256xf32>
    %cst_13 = arith.constant 0.000000e+00 : f32
    %45 = vector.broadcast %cst_13 : f32 to vector<4x256xf32>
    %46 = arith.select %38, %44, %45 : vector<4x256xi1>, vector<4x256xf32>
    %47 = arith.mulf %46, %23 : vector<4x256xf32>
    %cst_14 = arith.constant dense<0.000000e+00> : vector<256xf32>
    %48 = vector.multi_reduction <add>, %47, %cst_14 [0] : vector<4x256xf32> to vector<256xf32>
    %49 = vector.shape_cast %48 : vector<256xf32> to vector<1x256xf32>
    %c255_i32 = arith.constant 255 : i32
    %50 = vector.broadcast %c255_i32 : i32 to vector<1x256xi32>
    %51 = arith.cmpi ne, %6, %50 : vector<1x256xi32>
    %c0_15 = arith.constant 0 : index
    %c0_16 = arith.constant 0 : index
    %c0_17 = arith.constant 0 : index
    %52 = vector.load %arg5[%c0_15, %c0_16, %c0_17] : memref<1x1x256xf32, #tpu.memory_space<vmem>>, vector<1x1x256xf32>
    %53 = vector.shape_cast %52 : vector<1x1x256xf32> to vector<1x256xf32>
    %cst_18 = arith.constant 0.000000e+00 : f32
    %54 = vector.broadcast %cst_18 : f32 to vector<1x256xf32>
    %55 = arith.select %51, %49, %54 : vector<1x256xi1>, vector<1x256xf32>
    %56 = arith.addf %53, %55 : vector<1x256xf32>
    %c0_19 = arith.constant 0 : index
    %c0_20 = arith.constant 0 : index
    %c0_21 = arith.constant 0 : index
    %57 = vector.load %arg5[%c0_19, %c0_20, %c0_21] : memref<1x1x256xf32, #tpu.memory_space<vmem>>, vector<1x1x256xf32>
    %58 = vector.shape_cast %57 : vector<1x1x256xf32> to vector<1x256xf32>
    %59 = vector.shape_cast %56 : vector<1x256xf32> to vector<1x1x256xf32>
    tpu.vector_store %arg5[%c0_19, %c0_20, %c0_21], %59 {strides = array<i32>} : memref<1x1x256xf32, #tpu.memory_space<vmem>>, vector<1x1x256xf32>,
    return
  }
  func.func @transform_0(%arg0: i32, %arg1: i32, %arg2: i32) -> (i32, i32, i32) {
    %c1_i32 = arith.constant 1 : i32
    %0 = arith.muli %arg1, %c1_i32 : i32
    %1 = arith.addi %0, %arg2 : i32
    %c0_i32 = arith.constant 0 : i32
    %c0_i32_0 = arith.constant 0 : i32
    return %arg0, %c0_i32, %1 : i32, i32, i32
  }
  func.func @transform_1(%arg0: i32, %arg1: i32, %arg2: i32) -> (i32, i32, i32) {
    %c1_i32 = arith.constant 1 : i32
    %0 = arith.muli %arg1, %c1_i32 : i32
    %1 = arith.addi %0, %arg2 : i32
    %c0_i32 = arith.constant 0 : i32
    %c0_i32_0 = arith.constant 0 : i32
    return %arg0, %c0_i32, %1 : i32, i32, i32
  }
  func.func @transform_2(%arg0: i32, %arg1: i32, %arg2: i32) -> (i32, i32, i32) {
    %c1_i32 = arith.constant 1 : i32
    %0 = arith.muli %arg0, %c1_i32 : i32
    %1 = arith.addi %0, %arg1 : i32
    %c0_i32 = arith.constant 0 : i32
    %c0_i32_0 = arith.constant 0 : i32
    %c0_i32_1 = arith.constant 0 : i32
    return %1, %c0_i32, %c0_i32_0 : i32, i32, i32
  }
}

</mosaic_0001>

<llo_original>
// kernel: tpu_custom_call.1
$region0: #{tpu_custom_call.1}
  #allocation0 [shape = 'u32[]', space=smem, size = 0x4, offset = 0x4, fixed_abs, tag = 'smem constant byte address 0x4 - core index']
  #allocation1 [shape = 'u32[144,128]{1,0:T(1,128)}', space=vmem, size = 0x12000, scoped, tag = 'internal scratch']
  %s0 = inlined_call_operand.hbm [shape: s32[2,1,256], index: 0, kind: input, shape index: {}]
  %s1 = inlined_call_operand.hbm [shape: f32[2,4,256], index: 1, kind: input, shape index: {}]
  %s2 = inlined_call_operand.hbm [shape: f32[2,1,256], index: 2, kind: output, shape index: {}]
  %s3 = sld [smem:[#allocation0]]
  $region53: #{tpu_custom_call.1} parent=0
    _
  %s5 = ssub.s32 1, %s3
  %s6 = scalar_select 0, %s5, %s3
  $region1: #{tpu_custom_call.1} parent=0
    #allocation2 [shape = 'u8[2048]{0}', space=vmem, size = 0x800, scoped, tag = 'input window, operand 0']
    #allocation3 [shape = 's32[2]{0}', space=sflag, size = 0x8, scoped, tag = 'scoped memory for tpu_custom_call.1']
    #allocation4 [shape = 's32[2]{0}', space=sflag, size = 0x8, scoped, tag = 'scoped memory for tpu_custom_call.1']
    #allocation5 [shape = 'u8[8192]{0}', space=vmem, size = 0x2000, scoped, tag = 'input window, operand 1']
    #allocation6 [shape = 's32[2]{0}', space=sflag, size = 0x8, scoped, tag = 'scoped memory for tpu_custom_call.1']
    #allocation7 [shape = 'u8[2048]{0}', space=vmem, size = 0x800, scoped, tag = 'output window, operand 0']
    %7 = vsyncpa [#allocation3], 0
    %s8 = scalar_lea.sflag [#allocation3], 1
    %9 = vsyncpa %s8, 0
    %10 = vsyncpa [#allocation6], 0
    %s11 = scalar_lea.sflag [#allocation6], 1
    %12 = vsyncpa %s11, 0
    %13 = vsyncpa [#allocation4], 0
    %s14 = scalar_lea.sflag [#allocation4], 1
    %15 = vsyncpa %s14, 0
    loop: start=0, step=1, limit=4
    $region2: #{tpu_custom_call.1} parent=1 // loop_pre_header
      _
    $region3: #{tpu_custom_call.1} parent=1 // loop_header
      %s17 = sphi 0, %s21
      %p18 = scmp.ge.s32.totalorder %s17, 4
      %s24 = sphi 0, %s43
      %s25 = sphi 0, %s39
      %s26 = sphi 0, %s35
      %s27 = sphi 0, %s24
      %s28 = sphi 0, %s25
      %s29 = sphi 0, %s26
      %s30 = sphi 0, %s27
      %s31 = sphi 0, %s28
      %s32 = sphi 0, %s29
      %s50 = sphi 0, %s52
      %s53 = sphi 0, %s50
      %s54 = sphi 0, %s53
      %s70 = sphi 0, %s54
      %s80 = sphi 0, %s82
      %s83 = sphi 0, %s80
      %s84 = sphi 0, %s83
      %s100 = sphi 0, %s84
      %s108 = sphi 0, %s110
      %s111 = sphi 0, %s108
      %s112 = sphi 0, %s111
      %s128 = sphi 0, %s112
    $region4: #{tpu_custom_call.1} parent=1 // loop_header_branch
      %20 = sbr.rel (%p18) target = $region8
    $region5: #{tpu_custom_call.1} parent=1 // loop_body
      %s22 = ssub.s32 %s17, 1
      %s23 = ssub.s32 %s17, 2
      %s33 = sadd.s32 1, %s26
      %p34 = scmp.ge.s32.totalorder %s33, 1
      %s35 = scalar_select %p34, 0, %s33
      %s36 = sadd.s32 1, %s25
      %s37 = scalar_select %p34, %s36, %s25
      %p38 = scmp.ge.s32.totalorder %s37, 1
      %s39 = scalar_select %p38, 0, %s37
      %s40 = sadd.s32 1, %s24
      %s41 = scalar_select %p38, %s40, %s24
      %p42 = scmp.ge.s32.totalorder %s41, 2
      %s43 = scalar_select %p42, 0, %s41
      %s44 = sadd.s32 %s25, %s26
      %s45 = sadd.s32 %s39, %s35
      %s46 = ssub.s32 %s24, %s43
      %s47 = ssub.s32 %s44, %s45
      %s48 = sor.u32 %s46, %s47
      %p49 = scmp.eq.s32.totalorder %s48, 0
      %s51 = sadd.s32 %s50, 1
      %s52 = scalar_select %p49, %s50, %s51
      %p55 = pneg %p49
      %p56 = scmp.eq.s32.totalorder %s17, 1
      %p57 = por %p55, %p56
      %p58 = scmp.ne.s32.totalorder %s50, %s53
      %p59 = scmp.eq.s32.totalorder %s17, 0
      %p60 = por %p58, %p59
      %p61 = scmp.ne.s32.totalorder %s50, %s53
      %p62 = scmp.eq.s32.totalorder %s22, 1
      %p63 = por %p61, %p62
      %p64 = scmp.ne.s32.totalorder %s53, %s54
      %p65 = scmp.eq.s32.totalorder %s22, 0
      %p66 = por %p64, %p65
      %p67 = scmp.ne.s32.totalorder %s53, %s54
      %p68 = scmp.eq.s32.totalorder %s23, 1
      %p69 = por %p67, %p68
      %p71 = scmp.ne.s32.totalorder %s54, %s70
      %p72 = scmp.eq.s32.totalorder %s23, 0
      %p73 = por %p71, %p72
      %s74 = sadd.s32 %s25, %s26
      %s75 = sadd.s32 %s39, %s35
      %s76 = ssub.s32 %s24, %s43
      %s77 = ssub.s32 %s74, %s75
      %s78 = sor.u32 %s76, %s77
      %p79 = scmp.eq.s32.totalorder %s78, 0
      %s81 = sadd.s32 %s80, 1
      %s82 = scalar_select %p79, %s80, %s81
      %p85 = pneg %p79
      %p86 = scmp.eq.s32.totalorder %s17, 1
      %p87 = por %p85, %p86
      %p88 = scmp.ne.s32.totalorder %s80, %s83
      %p89 = scmp.eq.s32.totalorder %s17, 0
      %p90 = por %p88, %p89
      %p91 = scmp.ne.s32.totalorder %s80, %s83
      %p92 = scmp.eq.s32.totalorder %s22, 1
      %p93 = por %p91, %p92
      %p94 = scmp.ne.s32.totalorder %s83, %s84
      %p95 = scmp.eq.s32.totalorder %s22, 0
      %p96 = por %p94, %p95
      %p97 = scmp.ne.s32.totalorder %s83, %s84
      %p98 = scmp.eq.s32.totalorder %s23, 1
      %p99 = por %p97, %p98
      %p101 = scmp.ne.s32.totalorder %s84, %s100
      %p102 = scmp.eq.s32.totalorder %s23, 0
      %p103 = por %p101, %p102
      %s104 = sadd.s32 %s24, %s25
      %s105 = sadd.s32 %s43, %s39
      %s106 = ssub.s32 %s104, %s105
      %p107 = scmp.eq.s32.totalorder %s106, 0
      %s109 = sadd.s32 %s108, 1
      %s110 = scalar_select %p107, %s108, %s109
      %p113 = pneg %p107
      %p114 = scmp.eq.s32.totalorder %s17, 1
      %p115 = por %p113, %p114
      %p116 = scmp.ne.s32.totalorder %s108, %s111
      %p117 = scmp.eq.s32.totalorder %s17, 0
      %p118 = por %p116, %p117
      %p119 = scmp.ne.s32.totalorder %s108, %s111
      %p120 = scmp.eq.s32.totalorder %s22, 1
      %p121 = por %p119, %p120
      %p122 = scmp.ne.s32.totalorder %s111, %s112
      %p123 = scmp.eq.s32.totalorder %s22, 0
      %p124 = por %p122, %p123
      %p125 = scmp.ne.s32.totalorder %s111, %s112
      %p126 = scmp.eq.s32.totalorder %s23, 1
      %p127 = por %p125, %p126
      %p129 = scmp.ne.s32.totalorder %s112, %s128
      %p130 = scmp.eq.s32.totalorder %s23, 0
      %p131 = por %p129, %p130
      %p132 = scmp.le.s32.totalorder 1, %s17
      %p133 = scmp.lt.s32.totalorder %s17, 3
      %p134 = pnand %p132, %p133
      %p135 = pneg %p134
      // Predicated region
      $region9: #{tpu_custom_call.1} parent=5 // pred_check
        _
      $region10: #{tpu_custom_call.1} parent=5 // pred_check_branch
        %137 = sbr.rel (%p134) target = $region12
      $region11: #{tpu_custom_call.1} parent=5 // pred_region
        %s138 = ssub.s32 %s17, 1
      $region12: #{tpu_custom_call.1} parent=5 // pred_fallthru
        _
      %p139 = scmp.lt.s32.totalorder %s17, 2
      // Predicated region
      $region13: #{tpu_custom_call.1} parent=5 // pred_check
        %p140 = pneg %p139
      $region14: #{tpu_custom_call.1} parent=5 // pred_check_branch
        %142 = sbr.rel (%p140) target = $region16
      $region15: #{tpu_custom_call.1} parent=5 // pred_region
        // Predicated region
        $region17: #{tpu_custom_call.1} parent=15 // pred_check
          %p143 = pneg %p60
        $region18: #{tpu_custom_call.1} parent=15 // pred_check_branch
          %145 = sbr.rel (%p143) target = $region20
        $region19: #{tpu_custom_call.1} parent=15 // pred_region
          %s146 = sand.u32 %s50, 1
          %s147 = scalar_lea.sflag [#allocation3], %s146
          %s148 = sand.u32 %s50, 1
          %s149 = smul.addr %s148, 2
          %s150 = scalar_lea.vmem [#allocation2], %s149
          %s151 = sadd.s32 %s25, %s26
          %s152 = smul.u32 2, %s151
          %s154 = ssub.s32 32, 32
          %155 = vsyncadd %s147, %s154
          %s156 = smul.addr %s24, 2
          %s157 = sadd.s32 %s152, %s156
          %s158 = smul.addr %s157, 16
          %s159 = scalar_lea.hbm %s0, %s158
          %s161 = sshll.u32 %s150, 4
          %s162 = int_to_ptr.vmem [resolvable:$true] %s161
          %164 = dma.hbm_to_vmem [thread:$0]  %s159, 32, %s162, %s147
        $region20: #{tpu_custom_call.1} parent=15 // pred_fallthru
          _
        // Predicated region
        $region21: #{tpu_custom_call.1} parent=15 // pred_check
          %p165 = pneg %p90
        $region22: #{tpu_custom_call.1} parent=15 // pred_check_branch
          %167 = sbr.rel (%p165) target = $region24
        $region23: #{tpu_custom_call.1} parent=15 // pred_region
          %s168 = sand.u32 %s80, 1
          %s169 = scalar_lea.sflag [#allocation6], %s168
          %s170 = sand.u32 %s80, 1
          %s171 = smul.addr %s170, 8
          %s172 = scalar_lea.vmem [#allocation5], %s171
          %s173 = sadd.s32 %s25, %s26
          %s174 = smul.u32 2, %s173
          %s176 = ssub.s32 128, 128
          %177 = vsyncadd %s169, %s176
          %s178 = smul.addr %s24, 2
          %s179 = sadd.s32 %s174, %s178
          %s180 = smul.addr %s179, 64
          %s181 = scalar_lea.hbm %s1, %s180
          %s183 = sshll.u32 %s172, 4
          %s184 = int_to_ptr.vmem [resolvable:$true] %s183
          %186 = dma.hbm_to_vmem [thread:$0]  %s181, 128, %s184, %s169
        $region24: #{tpu_custom_call.1} parent=15 // pred_fallthru
          _
      $region16: #{tpu_custom_call.1} parent=5 // pred_fallthru
        _
      %p187 = scmp.le.s32.totalorder 1, %s17
      %p188 = scmp.lt.s32.totalorder %s17, 3
      %p189 = pnand %p187, %p188
      %p190 = pneg %p189
      // Predicated region
      $region25: #{tpu_custom_call.1} parent=5 // pred_check
        _
      $region26: #{tpu_custom_call.1} parent=5 // pred_check_branch
        %192 = sbr.rel (%p189) target = $region28
      $region27: #{tpu_custom_call.1} parent=5 // pred_region
        %s193 = ssub.s32 %s17, 1
        %s194 = sand.u32 %s53, 1
        %s195 = scalar_lea.sflag [#allocation3], %s194
        %s196 = sand.u32 %s53, 1
        %s197 = smul.addr %s196, 2
        %s198 = scalar_lea.vmem [#allocation2], %s197
        // Predicated region
        $region29: #{tpu_custom_call.1} parent=27 // pred_check
          %p199 = pneg %p66
        $region30: #{tpu_custom_call.1} parent=27 // pred_check_branch
          %201 = sbr.rel (%p199) target = $region32
        $region31: #{tpu_custom_call.1} parent=27 // pred_region
          %202 = dma.done %s195, 32
        $region32: #{tpu_custom_call.1} parent=27 // pred_fallthru
          _
        %s203 = sand.u32 %s83, 1
        %s204 = scalar_lea.sflag [#allocation6], %s203
        %s205 = sand.u32 %s83, 1
        %s206 = smul.addr %s205, 8
        %s207 = scalar_lea.vmem [#allocation5], %s206
        // Predicated region
        $region33: #{tpu_custom_call.1} parent=27 // pred_check
          %p208 = pneg %p96
        $region34: #{tpu_custom_call.1} parent=27 // pred_check_branch
          %210 = sbr.rel (%p208) target = $region36
        $region35: #{tpu_custom_call.1} parent=27 // pred_region
          %211 = dma.done %s204, 128
        $region36: #{tpu_custom_call.1} parent=27 // pred_fallthru
          _
        %s212 = sand.u32 %s53, 1
        %s213 = scalar_lea.sflag [#allocation3], %s212
        %s214 = sand.u32 %s53, 1
        %s215 = smul.addr %s214, 2
        %s216 = scalar_lea.vmem [#allocation2], %s215
        %p217 = pneg %p66
        %p218 = pneg %p63
        %s219 = sand.u32 %s83, 1
        %s220 = scalar_lea.sflag [#allocation6], %s219
        %s221 = sand.u32 %s83, 1
        %s222 = smul.addr %s221, 8
        %s223 = scalar_lea.vmem [#allocation5], %s222
        %p224 = pneg %p96
        %p225 = pneg %p93
        %p226 = pneg %p124
        %p227 = pneg %p121
        %s228 = sand.u32 %s111, 1
        %s229 = scalar_lea.sflag [#allocation4], %s228
        %s230 = sand.u32 %s111, 1
        %s231 = smul.addr %s230, 2
        %s232 = scalar_lea.vmem [#allocation7], %s231
        %s233 = sadd.s32 %s28, %s29
        %s234 = smul.u32 2, %s233
        %s235 = sadd.s32 %s28, %s29
        %s236 = smul.u32 2, %s235
        %s237 = sadd.s32 %s27, %s28
        %p238 = scmp.eq.s32.totalorder %s29, 0
        // Predicated region
        $region37: #{tpu_custom_call.1} parent=27 // pred_check
          %p239 = pneg %p238
        $region38: #{tpu_custom_call.1} parent=27 // pred_check_branch
          %241 = sbr.rel (%p239) target = $region40
        $region39: #{tpu_custom_call.1} parent=27 // pred_region
          %v242 = vlaneseq
          %vm243 = vcmp.ge.s32.totalorder %v242, 0
          %vm244 = vcmp.lt.s32.totalorder %v242, 256
          %vm245 = vmand %vm243, %vm244
          %246 = vst.msk [vmem:[%s232] sm:$0x3] %vm245, 0.0
        $region40: #{tpu_custom_call.1} parent=27 // pred_fallthru
          _
        %v247 = vld [vmem:[%s207] sm:$0xff]
        %v248 = vld [vmem:[%s198] sm:$0x3]
        %v250 = vcombine.high %v247, %v247
        %vm252 = vcmask 1043456
        %v253 = vsel %vm252, %v247, -inf
        %v254 = vrot.slane %v253, 4
        %v255 = vmax.f32 %v253, %v254
        %v256 = vrot.slane %v255, 2
        %v257 = vmax.f32 %v255, %v256
        %v258 = vrot.slane %v257, 1
        %v259 = vmax.f32 %v257, %v258
        %v260 = vsel %vm252, %v250, -inf
        %v261 = vrot.slane %v260, 4
        %v262 = vmax.f32 %v260, %v261
        %v263 = vrot.slane %v262, 2
        %v264 = vmax.f32 %v262, %v263
        %v265 = vrot.slane %v264, 1
        %v266 = vmax.f32 %v264, %v265
        %v269 = vcombine.low %v259, %v266
        %v271 = vsub.f32 %v247, %v269
        %v272 = vmul.f32 %v271, 1.442695
        %v273 = vpow.pop %v272
        %v275 = vcombine.high %v273, %v273
        %v277 = vsel %vm252, %v273, 0.0
        %v278 = vrot.slane %v277, 4
        %v279 = vadd.f32 %v277, %v278
        %v280 = vrot.slane %v279, 2
        %v281 = vadd.f32 %v279, %v280
        %v282 = vrot.slane %v281, 1
        %v283 = vadd.f32 %v281, %v282
        %v284 = vsel %vm252, %v275, 0.0
        %v285 = vrot.slane %v284, 4
        %v286 = vadd.f32 %v284, %v285
        %v287 = vrot.slane %v286, 2
        %v288 = vadd.f32 %v286, %v287
        %v289 = vrot.slane %v288, 1
        %v290 = vadd.f32 %v288, %v289
        %v291 = vrcp.pop %v283
        %v292 = vrcp.pop %v290
        %v295 = vcombine.low %v291, %v292
        %v297 = vmul.f32 %v273, %v295
        %v298 = vlog2.pop %v283
        %v299 = vmul.f32 %v298, 0.6931472
        %v300 = vlog2.pop %v290
        %v301 = vmul.f32 %v300, 0.6931472
        %v304 = vcombine.low %v299, %v301
        %v306 = vsub.f32 %v271, %v304
        %v307 = vsub.f32 1.0, %v297
        %v308 = vmul.f32 %v307, %v307
        %v309 = vmul.f32 %v308, %v306
        %v310 = vlaneseq
        %v311 = vshrl.u32 %v310, 7
        %v312 = vlaneseq
        %v313 = vshrl.u32 %v312, 7
        %v314 = vsub.s32 0, %v313
        %v315 = vrot.slane %v248, %v314
        %v316 = vlaneseq
        %v317 = vshrl.u32 %v316, 7
        %v318 = vsub.s32 1, %v317
        %v319 = vrot.slane %v248, %v318
        %v320 = vsub.s32 %v311, %v315
        %v321 = vsub.s32 %v311, %v319
        %vm322 = vcmp.lt.s32.totalorder %v320, 0
        %v323 = vsub.s32 0, %v320
        %v324 = vsel %vm322, %v323, %v320
        %vm325 = vcmp.lt.s32.totalorder %v321, 0
        %v326 = vsub.s32 0, %v321
        %v327 = vsel %vm325, %v326, %v321
        %vm328 = vcmp.eq.s32.totalorder %v248, 0
        %vm329 = vcmp.eq.s32.totalorder %v248, 3
        %vm330 = vmor %vm328, %vm329
        %v331 = vsel %vm330, 0.95, 0.9
        %vm332 = vcmp.le.s32.totalorder %v324, 1
        %vm333 = vcmp.le.s32.totalorder %v327, 1
        %vm334 = vcmp.eq.s32.totalorder %v324, 0
        %vm335 = vcmp.eq.s32.totalorder %v327, 0
        %v337 = vlaneseq
        %v338 = vshrl.u32 %v337, 7
        %v339 = vsub.s32 0, %v338
        %v340 = vrot.slane %v331, %v339
        %v341 = vlaneseq
        %v342 = vshrl.u32 %v341, 7
        %v343 = vsub.s32 1, %v342
        %v344 = vrot.slane %v331, %v343
        %v347 = vsel %vm334, %v340, 0.05
        %v348 = vsel %vm335, %v344, 0.05
        %v349 = vsel %vm332, %v347, 0.0
        %v350 = vsel %vm333, %v348, 0.0
        %v352 = vcombine.high %v309, %v309
        %v354 = vmul.f32 %v349, %v309
        %v355 = vmul.f32 %v350, %v352
        %v356 = vsel %vm252, %v354, 0.0
        %v357 = vrot.slane %v356, 4
        %v358 = vadd.f32 %v356, %v357
        %v359 = vrot.slane %v358, 2
        %v360 = vadd.f32 %v358, %v359
        %v361 = vrot.slane %v360, 1
        %v362 = vadd.f32 %v360, %v361
        %v363 = vsel %vm252, %v355, 0.0
        %v364 = vrot.slane %v363, 4
        %v365 = vadd.f32 %v363, %v364
        %v366 = vrot.slane %v365, 2
        %v367 = vadd.f32 %v365, %v366
        %v368 = vrot.slane %v367, 1
        %v369 = vadd.f32 %v367, %v368
        %vm370 = vcmp.ne.s32.totalorder %v248, 255
        %v371 = vld [vmem:[%s232] sm:$0x3]
        %v374 = vcombine.low %v362, %v369
        %v376 = vunpack.c.l.s4 1966171168
        %v377 = vunpack.c.0.s8 %v376
        %v378 = vlaneseq
        %v379 = vshrl.u32 %v378, 7
        %v380 = vsub.s32 %v377, %v379
        %v381 = vrot.slane %v374, %v380
        %v383 = vunpack.c.l.s4 1966171168
        %v384 = vunpack.c.0.s8 %v383
        %v385 = vlaneseq
        %v386 = vshrl.u32 %v385, 7
        %v387 = vsub.s32 %v384, %v386
        %v388 = vrot.slane %v381, %v387
        %v390 = vsel %vm370, %v388, 0.0
        %v391 = vadd.f32 %v371, %v390
        %v392 = vlaneseq
        %vm393 = vcmp.ge.s32.totalorder %v392, 0
        %vm394 = vcmp.lt.s32.totalorder %v392, 256
        %vm395 = vmand %vm393, %vm394
        %396 = vst.msk [vmem:[%s232] sm:$0x3] %vm395, %v391
        %s397 = sand.u32 %s111, 1
        %s398 = scalar_lea.sflag [#allocation4], %s397
        %s399 = sand.u32 %s111, 1
        %s400 = smul.addr %s399, 2
        %s401 = scalar_lea.vmem [#allocation7], %s400
        // Predicated region
        $region41: #{tpu_custom_call.1} parent=27 // pred_check
          %p402 = pneg %p121
        $region42: #{tpu_custom_call.1} parent=27 // pred_check_branch
          %404 = sbr.rel (%p402) target = $region44
        $region43: #{tpu_custom_call.1} parent=27 // pred_region
          %s405 = sadd.s32 %s27, %s28
          %s407 = ssub.s32 32, 32
          %408 = vsyncadd %s398, %s407
          %s409 = smul.addr %s405, 2
          %s410 = smul.addr %s409, 16
          %s411 = scalar_lea.hbm %s2, %s410
          %s413 = sshll.u32 %s401, 4
          %s414 = int_to_ptr.vmem [resolvable:$true] %s413
          %416 = dma.vmem_to_hbm [thread:$0]  %s414, 32, %s411, %s398
        $region44: #{tpu_custom_call.1} parent=27 // pred_fallthru
          _
      $region28: #{tpu_custom_call.1} parent=5 // pred_fallthru
        _
      %p417 = scmp.le.s32.totalorder 2, %s17
      // Predicated region
      $region45: #{tpu_custom_call.1} parent=5 // pred_check
        %p418 = pneg %p417
      $region46: #{tpu_custom_call.1} parent=5 // pred_check_branch
        %420 = sbr.rel (%p418) target = $region48
      $region47: #{tpu_custom_call.1} parent=5 // pred_region
        %s421 = ssub.s32 %s17, 2
        // Predicated region
        $region49: #{tpu_custom_call.1} parent=47 // pred_check
          %p422 = pneg %p127
        $region50: #{tpu_custom_call.1} parent=47 // pred_check_branch
          %424 = sbr.rel (%p422) target = $region52
        $region51: #{tpu_custom_call.1} parent=47 // pred_region
          %s425 = sand.u32 %s112, 1
          %s426 = scalar_lea.sflag [#allocation4], %s425
          %s427 = sand.u32 %s112, 1
          %s428 = smul.addr %s427, 2
          %s429 = scalar_lea.vmem [#allocation7], %s428
          %430 = dma.done %s426, 32
        $region52: #{tpu_custom_call.1} parent=47 // pred_fallthru
          _
      $region48: #{tpu_custom_call.1} parent=5 // pred_fallthru
        _
    $region6: #{tpu_custom_call.1} parent=1 // loop_footer
      %s21 = sadd.s32 1, %s17
    $region7: #{tpu_custom_call.1} parent=1 // loop_footer_branch
      %16 = sbr.rel target = $region3
    $region8: #{tpu_custom_call.1} parent=1 // loop_exit
      _
    %431 = vsyncpa [#allocation3], 1
    %s432 = scalar_lea.sflag [#allocation3], 1
    %433 = vsyncpa %s432, 1
    %434 = vsyncpa [#allocation6], 1
    %s435 = scalar_lea.sflag [#allocation6], 1
    %436 = vsyncpa %s435, 1
    %437 = vsyncpa [#allocation4], 1
    %s438 = scalar_lea.sflag [#allocation4], 1
    %439 = vsyncpa %s438, 1

</llo_original>
